<compile_context>
chip_gen: v7x
topology: tpu7x:2x2x1
jax: 0.10.0
libtpu: 0.0.40
codegen_flags: <defaults>
</compile_context>

<pallas_src>
import jax
import jax.numpy as jnp
from jax import lax
from jax.experimental import pallas as pl
from jax.experimental.pallas import tpu as pltpu


# TODO(synk): SemanticLadderLossHelper.get_comparison_programs (numpy dict
# lookups / np.random sampling / behavior-distance matrix) and the external
# Encoder nn.Module have no Pallas equivalent; their outputs (latent
# representations) are taken as kernel inputs.


def _make_ladder_loss_kernel(margins, weights, num_levels, batch, tile_b,
                             batch_on_lanes):
    """Ladder-loss kernel for one batch tile; hyperparameters baked in.

    batch_on_lanes=True  -> tiles are [D, TB] (batch on the 128-lane axis,
                            reductions over D along sublanes).  Used when D is
                            not a multiple of 128.
    batch_on_lanes=False -> tiles are [TB, D] (module-native layout, D lanes).
    """
    margins = tuple(float(m) for m in margins)
    weights = tuple(float(w) for w in weights)
    inv_b = 1.0 / float(batch)
    red_axis = 0 if batch_on_lanes else 1  # axis holding the latent dim D

    def kernel(anchor_ref, pos_ref, neg_ref, out_ref):
        # Cast to f32 on load (inputs may be bf16); all math stays f32 — v5e
        # has no bf16 VPU and this path is HBM-bound anyway.
        a = anchor_ref[...].astype(jnp.float32)          # [D,TB] or [TB,D]
        # Anchor norm hoisted once per tile.  Norms taken individually (not
        # rsqrt of the squared product) so ||a||^2*||x||^2 cannot overflow f32
        # and the math matches F.cosine_similarity / the reference exactly.
        a_norm = jnp.sqrt(jnp.sum(a * a, axis=red_axis, keepdims=True))

        def cos_sim(x):
            dot = jnp.sum(a * x, axis=red_axis, keepdims=True)
            x_norm = jnp.sqrt(jnp.sum(x * x, axis=red_axis, keepdims=True))
            return dot / jnp.maximum(a_norm * x_norm, 1e-8)

        # Mask rows past the true batch (ragged last tile).  jnp.where (not a
        # multiply) so garbage in the out-of-bounds block region can't leak
        # NaNs into the sum.
        row0 = pl.program_id(0) * tile_b
        if batch_on_lanes:
            rows = row0 + lax.broadcasted_iota(jnp.int32, (1, tile_b), 1)
        else:
            rows = row0 + lax.broadcasted_iota(jnp.int32, (tile_b, 1), 0)
        valid = rows < batch

        total = jnp.zeros((1, 1), jnp.float32)
        # Level 0 positive = batched_positives; level l>0 positive is level
        # l-1's negative, so its cosine is carried instead of recomputed.
        cos_p = cos_sim(pos_ref[...].astype(jnp.float32))
        for lv in range(num_levels):
            cos_n = cos_sim(neg_ref[lv].astype(jnp.float32))
            # pos_dist - neg_dist == (1-cos_p)/2 - (1-cos_n)/2
            #                     == 0.5 * (cos_n - cos_p)
            losses = jnp.maximum(0.5 * (cos_n - cos_p) + margins[lv], 0.0)
            losses = jnp.where(valid, losses, 0.0)
            total = total + jnp.sum(losses, keepdims=True) * (
                weights[lv] * inv_b)
            cos_p = cos_n
        out_ref[...] = total

    return kernel


def _pick_tile(batch, feat, levels, itemsize,
               vmem_budget_bytes=28 * 1024 * 1024):
    """Largest batch tile whose double-buffered working set fits the budget.

    Budget is chosen to double-buffer comfortably inside a 48 MiB scoped VMEM
    limit, which is safe on v5e/v6e (128 MiB physical) and v7x (64 MiB).
    """
    # 2 pipeline buffers * (anchor + positives + L negatives) bytes per row.
    bytes_per_row = 2 * (levels + 2) * feat * itemsize
    max_tb = max(1, vmem_budget_bytes // bytes_per_row)
    if batch <= max_tb:
        return batch                          # single tile = full batch (full-dim block)
    return max(128, (max_tb // 128) * 128)    # multi-tile: keep (8,128)-aligned


def semantic_ladder_loss(anchor, batched_positives, batched_negatives,
                         margins, ladder_weights, *, interpret=False):
    """Pallas implementation of SemanticLadderLoss.forward's loss math.

    anchor:            [B, D]    (already squeeze(dim=0)'d)
    batched_positives: [B, D]    (encoder latents of positive programs)
    batched_negatives: [L, B, D] (encoder latents of negatives, per level)
    margins / ladder_weights: L floats each (module hyperparameters)
    Returns scalar float32 total loss.

    Feed bf16 latents when the encoder allows it — the kernel is ~1 flop/byte
    HBM-bound, so halving input bytes is ~2x wall clock; the f32 cast happens
    on load inside the kernel.
    """
    L, B, D = batched_negatives.shape
    assert anchor.shape == (B, D)
    assert batched_positives.shape == (B, D)
    assert len(margins) == L and len(ladder_weights) == L

    # Lane-dense layout choice:
    #   * D % 128 == 0 -> keep module-native [B, D] (D on lanes), no transpose.
    #   * otherwise    -> flip to [D, B] so the batch sits on the 128-lane
    #     axis; with small D (e.g. 32) this uses 4x fewer vregs / VALU ops and
    #     every reduction over D becomes a sublane combine.
    #     (In production have the encoder emit [D, B] directly so the wrapper
    #     transpose — an extra HBM pass — disappears.)
    batch_on_lanes = (D % 128) != 0

    itemsize = jnp.dtype(anchor.dtype).itemsize
    tb = _pick_tile(B, D, L, itemsize)
    num_tiles = pl.cdiv(B, tb)

    if batch_on_lanes:
        anchor_in = anchor.T                                    # [D, B]
        pos_in = batched_positives.T                            # [D, B]
        neg_in = jnp.transpose(batched_negatives, (0, 2, 1))    # [L, D, B]
        a_spec = pl.BlockSpec((D, tb), lambda i: (0, i))
        p_spec = pl.BlockSpec((D, tb), lambda i: (0, i))
        n_spec = pl.BlockSpec((L, D, tb), lambda i: (0, 0, i))
    else:
        anchor_in, pos_in, neg_in = anchor, batched_positives, batched_negatives
        a_spec = pl.BlockSpec((tb, D), lambda i: (i, 0))
        p_spec = pl.BlockSpec((tb, D), lambda i: (i, 0))
        n_spec = pl.BlockSpec((L, tb, D), lambda i: (0, i, 0))

    kernel = _make_ladder_loss_kernel(margins, ladder_weights, L, B, tb,
                                      batch_on_lanes)

    # Advisory cost so XLA can overlap this mem-bound call against the
    # encoder's matmuls instead of treating it as opaque.
    cost = pl.CostEstimate(
        flops=4 * (L + 1) * B * D,
        transcendentals=(L + 2) * B,                  # one sqrt per norm
        bytes_accessed=(L + 2) * B * D * itemsize + num_tiles * 4)

    partials = pl.pallas_call(
        kernel,
        out_shape=jax.ShapeDtypeStruct((num_tiles, 1), jnp.float32),
        grid=(num_tiles,),
        in_specs=[a_spec, p_spec, n_spec],
        out_specs=pl.BlockSpec((1, 1), lambda i: (i, 0)),
        compiler_params=pltpu.CompilerParams(
            # Each tile writes its own partial -> safe to shard across the two
            # TensorCores on v7x; on v5e/v6e it's a plain pipelined loop.
            dimension_semantics=("parallel",),
            vmem_limit_bytes=48 * 1024 * 1024),
        cost_estimate=cost,
        interpret=interpret,
    )(anchor_in, pos_in, neg_in)

    # Per-tile weighted partial sums (already scaled by 1/B); total = sum.
    return jnp.sum(partials)


def _reference_loss(anchor, positives, negatives, margins, weights):
    """Pure-JAX reference mirroring the PyTorch forward exactly."""
    def dist(a, b):
        cos = jnp.sum(a * b, -1) / jnp.maximum(
            jnp.linalg.norm(a, axis=-1) * jnp.linalg.norm(b, axis=-1), 1e-8)
        return 1.0 - (cos + 1.0) / 2.0

    total = 0.0
    L = negatives.shape[0]
    for lv in range(L):
        p = positives if lv == 0 else negatives[lv - 1]
        n = negatives[lv]
        losses = jnp.maximum(dist(anchor, p) - dist(anchor, n) + margins[lv],
                             0.0)
        total = total + jnp.mean(losses) * weights[lv]
    return total


if __name__ == "__main__":
    # Small shapes implied by the forward:
    #   batch B, ladder_levels L, latent dim D (encoder output, squeezed).
    B, D, L = 4, 32, 3

    key = jax.random.PRNGKey(0)
    k_anchor, k_pos, k_neg = jax.random.split(key, 3)

    # anchor comes in as [1, B, D] and is squeeze(dim=0)'d in forward.
    anchor_raw = jax.random.normal(k_anchor, (1, B, D), jnp.float32)
    anchor = jnp.squeeze(anchor_raw, axis=0)                         # [B, D]

    # Deterministic stand-ins for encoder(positive/negative program) latents.
    batched_positives = jax.random.normal(k_pos, (B, D), jnp.float32)
    batched_negatives = jax.random.normal(k_neg, (L, B, D), jnp.float32)

    # Module-constructor hyperparameters (len == ladder_levels).
    margins = [0.1, 0.2, 0.3]
    ladder_weights = [1.0, 0.5, 0.25]

    loss = semantic_ladder_loss(anchor, batched_positives, batched_negatives,
                                margins, ladder_weights)
    loss = jax.block_until_ready(loss)

    ref = _reference_loss(anchor, batched_positives, batched_negatives,
                          margins, ladder_weights)
    assert jnp.allclose(loss, ref, atol=1e-5, rtol=1e-5), (loss, ref)

    print("KERNEL_OK")
</pallas_src>

<mosaic_0001>
module attributes {stable_mosaic.version = 11 : i64} {
  func.func @kernel(%arg0: i32, %arg1: memref<32x4xf32, #tpu.memory_space<vmem>>, %arg2: memref<32x4xf32, #tpu.memory_space<vmem>>, %arg3: memref<3x32x4xf32, #tpu.memory_space<vmem>>, %arg4: memref<1x1xf32, #tpu.memory_space<vmem>>) attributes {dimension_semantics = [#tpu.dimension_semantics<parallel>], iteration_bounds = array<i64: 1>, scalar_prefetch = 0 : i64, scratch_operands = 0 : i64, tpu.core_type = #tpu.core_type<tc>, window_params = [{transform_indices = @transform_0, window_bounds = array<i64: 32, 4>}, {transform_indices = @transform_1, window_bounds = array<i64: 32, 4>}, {transform_indices = @transform_2, window_bounds = array<i64: 3, 32, 4>}, {transform_indices = @transform_3, window_bounds = array<i64: 1, 1>}]} {
    %c0 = arith.constant 0 : index
    %c0_0 = arith.constant 0 : index
    %0 = vector.load %arg1[%c0, %c0_0] : memref<32x4xf32, #tpu.memory_space<vmem>>, vector<32x4xf32>
    %1 = arith.mulf %0, %0 : vector<32x4xf32>
    %cst = arith.constant dense<0.000000e+00> : vector<4xf32>
    %2 = vector.multi_reduction <add>, %1, %cst [0] : vector<32x4xf32> to vector<4xf32>
    %3 = vector.shape_cast %2 : vector<4xf32> to vector<1x4xf32>
    %4 = math.sqrt %3 : vector<1x4xf32>
    %c4_i32 = arith.constant 4 : i32
    %5 = arith.muli %arg0, %c4_i32 : i32
    %6 = tpu.iota {dimensions = array<i32: 1>} : vector<1x4xi32>
    %7 = vector.broadcast %5 : i32 to vector<1x4xi32>
    %8 = arith.addi %7, %6 : vector<1x4xi32>
    %c4_i32_1 = arith.constant 4 : i32
    %9 = vector.broadcast %c4_i32_1 : i32 to vector<1x4xi32>
    %10 = arith.cmpi slt, %8, %9 : vector<1x4xi32>
    %cst_2 = arith.constant 0.000000e+00 : f32
    %11 = vector.broadcast %cst_2 : f32 to vector<1x1xf32>
    %c0_3 = arith.constant 0 : index
    %c0_4 = arith.constant 0 : index
    %12 = vector.load %arg2[%c0_3, %c0_4] : memref<32x4xf32, #tpu.memory_space<vmem>>, vector<32x4xf32>
    %13 = arith.mulf %0, %12 : vector<32x4xf32>
    %cst_5 = arith.constant dense<0.000000e+00> : vector<4xf32>
    %14 = vector.multi_reduction <add>, %13, %cst_5 [0] : vector<32x4xf32> to vector<4xf32>
    %15 = vector.shape_cast %14 : vector<4xf32> to vector<1x4xf32>
    %16 = arith.mulf %12, %12 : vector<32x4xf32>
    %cst_6 = arith.constant dense<0.000000e+00> : vector<4xf32>
    %17 = vector.multi_reduction <add>, %16, %cst_6 [0] : vector<32x4xf32> to vector<4xf32>
    %18 = vector.shape_cast %17 : vector<4xf32> to vector<1x4xf32>
    %19 = math.sqrt %18 : vector<1x4xf32>
    %20 = arith.mulf %4, %19 : vector<1x4xf32>
    %cst_7 = arith.constant 9.99999993E-9 : f32
    %21 = vector.broadcast %cst_7 : f32 to vector<1x4xf32>
    %22 = arith.maximumf %20, %21 : vector<1x4xf32>
    %23 = arith.divf %15, %22 : vector<1x4xf32>
    %c0_8 = arith.constant 0 : index
    %c0_9 = arith.constant 0 : index
    %c0_10 = arith.constant 0 : index
    %24 = vector.load %arg3[%c0_8, %c0_9, %c0_10] : memref<3x32x4xf32, #tpu.memory_space<vmem>>, vector<1x32x4xf32>
    %25 = vector.shape_cast %24 : vector<1x32x4xf32> to vector<32x4xf32>
    %26 = arith.mulf %0, %25 : vector<32x4xf32>
    %cst_11 = arith.constant dense<0.000000e+00> : vector<4xf32>
    %27 = vector.multi_reduction <add>, %26, %cst_11 [0] : vector<32x4xf32> to vector<4xf32>
    %28 = vector.shape_cast %27 : vector<4xf32> to vector<1x4xf32>
    %29 = arith.mulf %25, %25 : vector<32x4xf32>
    %cst_12 = arith.constant dense<0.000000e+00> : vector<4xf32>
    %30 = vector.multi_reduction <add>, %29, %cst_12 [0] : vector<32x4xf32> to vector<4xf32>
    %31 = vector.shape_cast %30 : vector<4xf32> to vector<1x4xf32>
    %32 = math.sqrt %31 : vector<1x4xf32>
    %33 = arith.mulf %4, %32 : vector<1x4xf32>
    %cst_13 = arith.constant 9.99999993E-9 : f32
    %34 = vector.broadcast %cst_13 : f32 to vector<1x4xf32>
    %35 = arith.maximumf %33, %34 : vector<1x4xf32>
    %36 = arith.divf %28, %35 : vector<1x4xf32>
    %37 = arith.subf %36, %23 : vector<1x4xf32>
    %cst_14 = arith.constant 5.000000e-01 : f32
    %38 = vector.broadcast %cst_14 : f32 to vector<1x4xf32>
    %39 = arith.mulf %38, %37 : vector<1x4xf32>
    %cst_15 = arith.constant 1.000000e-01 : f32
    %40 = vector.broadcast %cst_15 : f32 to vector<1x4xf32>
    %41 = arith.addf %39, %40 : vector<1x4xf32>
    %cst_16 = arith.constant 0.000000e+00 : f32
    %42 = vector.broadcast %cst_16 : f32 to vector<1x4xf32>
    %43 = arith.maximumf %41, %42 : vector<1x4xf32>
    %cst_17 = arith.constant 0.000000e+00 : f32
    %44 = vector.broadcast %cst_17 : f32 to vector<1x4xf32>
    %45 = arith.select %10, %43, %44 : vector<1x4xi1>, vector<1x4xf32>
    %46 = vector.shape_cast %45 : vector<1x4xf32> to vector<1x1x4xf32>
    %cst_18 = arith.constant dense<0.000000e+00> : vector<1xf32>
    %47 = vector.multi_reduction <add>, %46, %cst_18 [1, 2] : vector<1x1x4xf32> to vector<1xf32>
    %48 = vector.shape_cast %47 : vector<1xf32> to vector<1x1x1xf32>
    %49 = vector.extract %48[0, 0, 0] : f32 from vector<1x1x1xf32>
    %50 = vector.broadcast %49 : f32 to vector<1x1xf32>
    %cst_19 = arith.constant 2.500000e-01 : f32
    %51 = vector.broadcast %cst_19 : f32 to vector<1x1xf32>
    %52 = arith.mulf %50, %51 : vector<1x1xf32>
    %53 = arith.addf %11, %52 : vector<1x1xf32>
    %c1 = arith.constant 1 : index
    %c0_20 = arith.constant 0 : index
    %c0_21 = arith.constant 0 : index
    %54 = vector.load %arg3[%c1, %c0_20, %c0_21] : memref<3x32x4xf32, #tpu.memory_space<vmem>>, vector<1x32x4xf32>
    %55 = vector.shape_cast %54 : vector<1x32x4xf32> to vector<32x4xf32>
    %56 = arith.mulf %0, %55 : vector<32x4xf32>
    %cst_22 = arith.constant dense<0.000000e+00> : vector<4xf32>
    %57 = vector.multi_reduction <add>, %56, %cst_22 [0] : vector<32x4xf32> to vector<4xf32>
    %58 = vector.shape_cast %57 : vector<4xf32> to vector<1x4xf32>
    %59 = arith.mulf %55, %55 : vector<32x4xf32>
    %cst_23 = arith.constant dense<0.000000e+00> : vector<4xf32>
    %60 = vector.multi_reduction <add>, %59, %cst_23 [0] : vector<32x4xf32> to vector<4xf32>
    %61 = vector.shape_cast %60 : vector<4xf32> to vector<1x4xf32>
    %62 = math.sqrt %61 : vector<1x4xf32>
    %63 = arith.mulf %4, %62 : vector<1x4xf32>
    %cst_24 = arith.constant 9.99999993E-9 : f32
    %64 = vector.broadcast %cst_24 : f32 to vector<1x4xf32>
    %65 = arith.maximumf %63, %64 : vector<1x4xf32>
    %66 = arith.divf %58, %65 : vector<1x4xf32>
    %67 = arith.subf %66, %36 : vector<1x4xf32>
    %cst_25 = arith.constant 5.000000e-01 : f32
    %68 = vector.broadcast %cst_25 : f32 to vector<1x4xf32>
    %69 = arith.mulf %68, %67 : vector<1x4xf32>
    %cst_26 = arith.constant 2.000000e-01 : f32
    %70 = vector.broadcast %cst_26 : f32 to vector<1x4xf32>
    %71 = arith.addf %69, %70 : vector<1x4xf32>
    %cst_27 = arith.constant 0.000000e+00 : f32
    %72 = vector.broadcast %cst_27 : f32 to vector<1x4xf32>
    %73 = arith.maximumf %71, %72 : vector<1x4xf32>
    %cst_28 = arith.constant 0.000000e+00 : f32
    %74 = vector.broadcast %cst_28 : f32 to vector<1x4xf32>
    %75 = arith.select %10, %73, %74 : vector<1x4xi1>, vector<1x4xf32>
    %76 = vector.shape_cast %75 : vector<1x4xf32> to vector<1x1x4xf32>
    %cst_29 = arith.constant dense<0.000000e+00> : vector<1xf32>
    %77 = vector.multi_reduction <add>, %76, %cst_29 [1, 2] : vector<1x1x4xf32> to vector<1xf32>
    %78 = vector.shape_cast %77 : vector<1xf32> to vector<1x1x1xf32>
    %79 = vector.extract %78[0, 0, 0] : f32 from vector<1x1x1xf32>
    %80 = vector.broadcast %79 : f32 to vector<1x1xf32>
    %cst_30 = arith.constant 1.250000e-01 : f32
    %81 = vector.broadcast %cst_30 : f32 to vector<1x1xf32>
    %82 = arith.mulf %80, %81 : vector<1x1xf32>
    %83 = arith.addf %53, %82 : vector<1x1xf32>
    %c2 = arith.constant 2 : index
    %c0_31 = arith.constant 0 : index
    %c0_32 = arith.constant 0 : index
    %84 = vector.load %arg3[%c2, %c0_31, %c0_32] : memref<3x32x4xf32, #tpu.memory_space<vmem>>, vector<1x32x4xf32>
    %85 = vector.shape_cast %84 : vector<1x32x4xf32> to vector<32x4xf32>
    %86 = arith.mulf %0, %85 : vector<32x4xf32>
    %cst_33 = arith.constant dense<0.000000e+00> : vector<4xf32>
    %87 = vector.multi_reduction <add>, %86, %cst_33 [0] : vector<32x4xf32> to vector<4xf32>
    %88 = vector.shape_cast %87 : vector<4xf32> to vector<1x4xf32>
    %89 = arith.mulf %85, %85 : vector<32x4xf32>
    %cst_34 = arith.constant dense<0.000000e+00> : vector<4xf32>
    %90 = vector.multi_reduction <add>, %89, %cst_34 [0] : vector<32x4xf32> to vector<4xf32>
    %91 = vector.shape_cast %90 : vector<4xf32> to vector<1x4xf32>
    %92 = math.sqrt %91 : vector<1x4xf32>
    %93 = arith.mulf %4, %92 : vector<1x4xf32>
    %cst_35 = arith.constant 9.99999993E-9 : f32
    %94 = vector.broadcast %cst_35 : f32 to vector<1x4xf32>
    %95 = arith.maximumf %93, %94 : vector<1x4xf32>
    %96 = arith.divf %88, %95 : vector<1x4xf32>
    %97 = arith.subf %96, %66 : vector<1x4xf32>
    %cst_36 = arith.constant 5.000000e-01 : f32
    %98 = vector.broadcast %cst_36 : f32 to vector<1x4xf32>
    %99 = arith.mulf %98, %97 : vector<1x4xf32>
    %cst_37 = arith.constant 3.000000e-01 : f32
    %100 = vector.broadcast %cst_37 : f32 to vector<1x4xf32>
    %101 = arith.addf %99, %100 : vector<1x4xf32>
    %cst_38 = arith.constant 0.000000e+00 : f32
    %102 = vector.broadcast %cst_38 : f32 to vector<1x4xf32>
    %103 = arith.maximumf %101, %102 : vector<1x4xf32>
    %cst_39 = arith.constant 0.000000e+00 : f32
    %104 = vector.broadcast %cst_39 : f32 to vector<1x4xf32>
    %105 = arith.select %10, %103, %104 : vector<1x4xi1>, vector<1x4xf32>
    %106 = vector.shape_cast %105 : vector<1x4xf32> to vector<1x1x4xf32>
    %cst_40 = arith.constant dense<0.000000e+00> : vector<1xf32>
    %107 = vector.multi_reduction <add>, %106, %cst_40 [1, 2] : vector<1x1x4xf32> to vector<1xf32>
    %108 = vector.shape_cast %107 : vector<1xf32> to vector<1x1x1xf32>
    %109 = vector.extract %108[0, 0, 0] : f32 from vector<1x1x1xf32>
    %110 = vector.broadcast %109 : f32 to vector<1x1xf32>
    %cst_41 = arith.constant 6.250000e-02 : f32
    %111 = vector.broadcast %cst_41 : f32 to vector<1x1xf32>
    %112 = arith.mulf %110, %111 : vector<1x1xf32>
    %113 = arith.addf %83, %112 : vector<1x1xf32>
    %c0_42 = arith.constant 0 : index
    %c0_43 = arith.constant 0 : index
    %114 = vector.load %arg4[%c0_42, %c0_43] : memref<1x1xf32, #tpu.memory_space<vmem>>, vector<1x1xf32>
    tpu.vector_store %arg4[%c0_42, %c0_43], %113 {strides = array<i32>} : memref<1x1xf32, #tpu.memory_space<vmem>>, vector<1x1xf32>,
    return
  }
  func.func @transform_0(%arg0: i32) -> (i32, i32) {
    %c0_i32 = arith.constant 0 : i32
    %c0_i32_0 = arith.constant 0 : i32
    return %c0_i32, %arg0 : i32, i32
  }
  func.func @transform_1(%arg0: i32) -> (i32, i32) {
    %c0_i32 = arith.constant 0 : i32
    %c0_i32_0 = arith.constant 0 : i32
    return %c0_i32, %arg0 : i32, i32
  }
  func.func @transform_2(%arg0: i32) -> (i32, i32, i32) {
    %c0_i32 = arith.constant 0 : i32
    %c0_i32_0 = arith.constant 0 : i32
    %c0_i32_1 = arith.constant 0 : i32
    return %c0_i32, %c0_i32_0, %arg0 : i32, i32, i32
  }
  func.func @transform_3(%arg0: i32) -> (i32, i32) {
    %c0_i32 = arith.constant 0 : i32
    %c0_i32_0 = arith.constant 0 : i32
    return %arg0, %c0_i32 : i32, i32
  }
}

</mosaic_0001>

<llo_original>
// kernel: tpu_custom_call.1
$region0: #{tpu_custom_call.1}
  #allocation0 [shape = 'u32[]', space=smem, size = 0x4, offset = 0x4, fixed_abs, tag = 'smem constant byte address 0x4 - core index']
  #allocation1 [shape = 'u32[144,128]{1,0:T(1,128)}', space=vmem, size = 0x12000, scoped, tag = 'internal scratch']
  %s0 = inlined_call_operand.vmem [shape: f32[32,4], index: 0, kind: input, shape index: {}]
  %s1 = inlined_call_operand.vmem [shape: f32[32,4], index: 1, kind: input, shape index: {}]
  %s2 = inlined_call_operand.vmem [shape: f32[3,32,4], index: 2, kind: input, shape index: {}]
  %s3 = inlined_call_operand.hbm [shape: f32[1,1], index: 3, kind: output, shape index: {}]
  %s4 = sld [smem:[#allocation0]]
  $region22: #{tpu_custom_call.1} parent=0
    _
  %s6 = ssub.s32 1, %s4
  %s7 = scalar_select 0, %s6, %s4
  $region1: #{tpu_custom_call.1} parent=0
    #allocation2 [shape = 'u8[512]{0}', space=vmem, size = 0x400, scoped, tag = 'output window, operand 0, single buffered']
    #allocation3 [shape = 's32[1]{0}', space=sflag, size = 0x4, scoped, tag = 'scoped memory for tpu_custom_call.1']
    %8 = vsyncpa [#allocation3], 0
    // Predicated region
    $region2: #{tpu_custom_call.1} parent=1 // pred_check
      _
    $region3: #{tpu_custom_call.1} parent=1 // pred_check_branch
      %10 = sbr.rel (0) target = $region5
    $region4: #{tpu_custom_call.1} parent=1 // pred_region
      _
    $region5: #{tpu_custom_call.1} parent=1 // pred_fallthru
      _
    // Predicated region
    $region6: #{tpu_custom_call.1} parent=1 // pred_check
      _
    $region7: #{tpu_custom_call.1} parent=1 // pred_check_branch
      %12 = sbr.rel (0) target = $region9
    $region8: #{tpu_custom_call.1} parent=1 // pred_region
      _
    $region9: #{tpu_custom_call.1} parent=1 // pred_fallthru
      _
    // Predicated region
    $region10: #{tpu_custom_call.1} parent=1 // pred_check
      _
    $region11: #{tpu_custom_call.1} parent=1 // pred_check_branch
      %14 = sbr.rel (0) target = $region13
    $region12: #{tpu_custom_call.1} parent=1 // pred_region
      _
    $region13: #{tpu_custom_call.1} parent=1 // pred_fallthru
      _
    %v15 = vld [vmem:[%s0] sm:$0xff]
    %v16 = vld [vmem:[%s0 + $0x8] sm:$0xff]
    %v17 = vld [vmem:[%s0 + $0x10] sm:$0xff]
    %v18 = vld [vmem:[%s0 + $0x18] sm:$0xff]
    %v19 = vmul.f32 %v15, %v15
    %v20 = vmul.f32 %v16, %v16
    %v21 = vmul.f32 %v17, %v17
    %v22 = vmul.f32 %v18, %v18
    %vm23 = vcmask 31744
    %v24 = vsel %vm23, %v19, 0.0
    %v25 = vsel %vm23, %v20, 0.0
    %v26 = vadd.f32 %v24, %v25
    %v27 = vsel %vm23, %v21, 0.0
    %v28 = vadd.f32 %v26, %v27
    %v29 = vsel %vm23, %v22, 0.0
    %v30 = vadd.f32 %v28, %v29
    %v31 = vrot.slane %v30, 4
    %v32 = vadd.f32 %v30, %v31
    %v33 = vrot.slane %v32, 2
    %v34 = vadd.f32 %v32, %v33
    %v35 = vrot.slane %v34, 1
    %v36 = vadd.f32 %v34, %v35
    %v37 = vrsqrt.pop %v36
    %v38 = vmul.f32 %v36, %v37
    %vm39 = vcmp.eq.f32.partialorder %v36, inf
    %v40 = vsel %vm39, %v36, %v38
    %vm41 = vcmp.eq.f32.partialorder %v36, 0.0
    %v42 = vand.u32 %v36, 2147483648
    %v43 = vsel %vm41, %v42, %v40
    %s44 = smul.u32 0, 4
    %v45 = vlaneseq
    %v46 = vand.u32 %v45, 127
    %v47 = vstv %s44
    %v48 = vadd.s32 %v47, %v46
    %vm49 = vcmp.lt.s32.totalorder %v48, 4
    %v50 = vld [vmem:[%s1] sm:$0xff]
    %v51 = vld [vmem:[%s1 + $0x8] sm:$0xff]
    %v52 = vld [vmem:[%s1 + $0x10] sm:$0xff]
    %v53 = vld [vmem:[%s1 + $0x18] sm:$0xff]
    %v54 = vmul.f32 %v15, %v50
    %v55 = vmul.f32 %v16, %v51
    %v56 = vmul.f32 %v17, %v52
    %v57 = vmul.f32 %v18, %v53
    %v58 = vsel %vm23, %v54, 0.0
    %v59 = vsel %vm23, %v55, 0.0
    %v60 = vadd.f32 %v58, %v59
    %v61 = vsel %vm23, %v56, 0.0
    %v62 = vadd.f32 %v60, %v61
    %v63 = vsel %vm23, %v57, 0.0
    %v64 = vadd.f32 %v62, %v63
    %v65 = vrot.slane %v64, 4
    %v66 = vadd.f32 %v64, %v65
    %v67 = vrot.slane %v66, 2
    %v68 = vadd.f32 %v66, %v67
    %v69 = vrot.slane %v68, 1
    %v70 = vadd.f32 %v68, %v69
    %v71 = vmul.f32 %v50, %v50
    %v72 = vmul.f32 %v51, %v51
    %v73 = vmul.f32 %v52, %v52
    %v74 = vmul.f32 %v53, %v53
    %v75 = vsel %vm23, %v71, 0.0
    %v76 = vsel %vm23, %v72, 0.0
    %v77 = vadd.f32 %v75, %v76
    %v78 = vsel %vm23, %v73, 0.0
    %v79 = vadd.f32 %v77, %v78
    %v80 = vsel %vm23, %v74, 0.0
    %v81 = vadd.f32 %v79, %v80
    %v82 = vrot.slane %v81, 4
    %v83 = vadd.f32 %v81, %v82
    %v84 = vrot.slane %v83, 2
    %v85 = vadd.f32 %v83, %v84
    %v86 = vrot.slane %v85, 1
    %v87 = vadd.f32 %v85, %v86
    %v88 = vrsqrt.pop %v87
    %v89 = vmul.f32 %v87, %v88
    %vm90 = vcmp.eq.f32.partialorder %v87, inf
    %v91 = vsel %vm90, %v87, %v89
    %vm92 = vcmp.eq.f32.partialorder %v87, 0.0
    %v93 = vand.u32 %v87, 2147483648
    %v94 = vsel %vm92, %v93, %v91
    %v95 = vmul.f32 %v43, %v94
    %v96 = vmax.f32 %v95, 1e-08
    %v97 = vrcp.pop %v96
    %v98 = vmul.f32 %v70, %v97
    %v99 = vld [vmem:[%s2] sm:$0xff]
    %v100 = vld [vmem:[%s2 + $0x8] sm:$0xff]
    %v101 = vld [vmem:[%s2 + $0x10] sm:$0xff]
    %v102 = vld [vmem:[%s2 + $0x18] sm:$0xff]
    %v103 = vmul.f32 %v15, %v99
    %v104 = vmul.f32 %v16, %v100
    %v105 = vmul.f32 %v17, %v101
    %v106 = vmul.f32 %v18, %v102
    %v107 = vsel %vm23, %v103, 0.0
    %v108 = vsel %vm23, %v104, 0.0
    %v109 = vadd.f32 %v107, %v108
    %v110 = vsel %vm23, %v105, 0.0
    %v111 = vadd.f32 %v109, %v110
    %v112 = vsel %vm23, %v106, 0.0
    %v113 = vadd.f32 %v111, %v112
    %v114 = vrot.slane %v113, 4
    %v115 = vadd.f32 %v113, %v114
    %v116 = vrot.slane %v115, 2
    %v117 = vadd.f32 %v115, %v116
    %v118 = vrot.slane %v117, 1
    %v119 = vadd.f32 %v117, %v118
    %v120 = vmul.f32 %v99, %v99
    %v121 = vmul.f32 %v100, %v100
    %v122 = vmul.f32 %v101, %v101
    %v123 = vmul.f32 %v102, %v102
    %v124 = vsel %vm23, %v120, 0.0
    %v125 = vsel %vm23, %v121, 0.0
    %v126 = vadd.f32 %v124, %v125
    %v127 = vsel %vm23, %v122, 0.0
    %v128 = vadd.f32 %v126, %v127
    %v129 = vsel %vm23, %v123, 0.0
    %v130 = vadd.f32 %v128, %v129
    %v131 = vrot.slane %v130, 4
    %v132 = vadd.f32 %v130, %v131
    %v133 = vrot.slane %v132, 2
    %v134 = vadd.f32 %v132, %v133
    %v135 = vrot.slane %v134, 1
    %v136 = vadd.f32 %v134, %v135
    %v137 = vrsqrt.pop %v136
    %v138 = vmul.f32 %v136, %v137
    %vm139 = vcmp.eq.f32.partialorder %v136, inf
    %v140 = vsel %vm139, %v136, %v138
    %vm141 = vcmp.eq.f32.partialorder %v136, 0.0
    %v142 = vand.u32 %v136, 2147483648
    %v143 = vsel %vm141, %v142, %v140
    %v144 = vmul.f32 %v43, %v143
    %v145 = vmax.f32 %v144, 1e-08
    %v146 = vrcp.pop %v145
    %v147 = vmul.f32 %v119, %v146
    %v148 = vsub.f32 %v147, %v98
    %v149 = vmul.f32 %v148, 0.5
    %v150 = vadd.f32 %v149, 0.1
    %v151 = vmax.f32 %v150, 0.0
    %v152 = vsel %vm49, %v151, 0.0
    %vm153 = vcmask 24576
    %v154 = vsel %vm153, %v152, 0.0
    %155 = vadd.xlane.f32.xlu0 %v154
    %v156 = vpop.xlane.xlu0 %155
    %v157 = vrot.slane %v156, 4
    %v158 = vadd.f32 %v156, %v157
    %v159 = vrot.slane %v158, 2
    %v160 = vadd.f32 %v158, %v159
    %v161 = vrot.slane %v160, 1
    %v162 = vadd.f32 %v160, %v161
    %s163 = vtos %v162
    %v164 = vstv %s163
    %v165 = vmul.f32 %v164, 0.25
    %v166 = vadd.f32 %v165, 0.0
    %s167 = scalar_lea.vmem %s2, 32
    %v168 = vld [vmem:[%s167] sm:$0xff]
    %v169 = vld [vmem:[%s167 + $0x8] sm:$0xff]
    %v170 = vld [vmem:[%s167 + $0x10] sm:$0xff]
    %v171 = vld [vmem:[%s167 + $0x18] sm:$0xff]
    %v172 = vmul.f32 %v15, %v168
    %v173 = vmul.f32 %v16, %v169
    %v174 = vmul.f32 %v17, %v170
    %v175 = vmul.f32 %v18, %v171
    %v176 = vsel %vm23, %v172, 0.0
    %v177 = vsel %vm23, %v173, 0.0
    %v178 = vadd.f32 %v176, %v177
    %v179 = vsel %vm23, %v174, 0.0
    %v180 = vadd.f32 %v178, %v179
    %v181 = vsel %vm23, %v175, 0.0
    %v182 = vadd.f32 %v180, %v181
    %v183 = vrot.slane %v182, 4
    %v184 = vadd.f32 %v182, %v183
    %v185 = vrot.slane %v184, 2
    %v186 = vadd.f32 %v184, %v185
    %v187 = vrot.slane %v186, 1
    %v188 = vadd.f32 %v186, %v187
    %v189 = vmul.f32 %v168, %v168
    %v190 = vmul.f32 %v169, %v169
    %v191 = vmul.f32 %v170, %v170
    %v192 = vmul.f32 %v171, %v171
    %v193 = vsel %vm23, %v189, 0.0
    %v194 = vsel %vm23, %v190, 0.0
    %v195 = vadd.f32 %v193, %v194
    %v196 = vsel %vm23, %v191, 0.0
    %v197 = vadd.f32 %v195, %v196
    %v198 = vsel %vm23, %v192, 0.0
    %v199 = vadd.f32 %v197, %v198
    %v200 = vrot.slane %v199, 4
    %v201 = vadd.f32 %v199, %v200
    %v202 = vrot.slane %v201, 2
    %v203 = vadd.f32 %v201, %v202
    %v204 = vrot.slane %v203, 1
    %v205 = vadd.f32 %v203, %v204
    %v206 = vrsqrt.pop %v205
    %v207 = vmul.f32 %v205, %v206
    %vm208 = vcmp.eq.f32.partialorder %v205, inf
    %v209 = vsel %vm208, %v205, %v207
    %vm210 = vcmp.eq.f32.partialorder %v205, 0.0
    %v211 = vand.u32 %v205, 2147483648
    %v212 = vsel %vm210, %v211, %v209
    %v213 = vmul.f32 %v43, %v212
    %v214 = vmax.f32 %v213, 1e-08
    %v215 = vrcp.pop %v214
    %v216 = vmul.f32 %v188, %v215
    %v217 = vsub.f32 %v216, %v147
    %v218 = vmul.f32 %v217, 0.5
    %v219 = vadd.f32 %v218, 0.2
    %v220 = vmax.f32 %v219, 0.0
    %v221 = vsel %vm49, %v220, 0.0
    %v222 = vsel %vm153, %v221, 0.0
    %223 = vadd.xlane.f32.xlu0 %v222
    %v224 = vpop.xlane.xlu0 %223
    %v225 = vrot.slane %v224, 4
    %v226 = vadd.f32 %v224, %v225
    %v227 = vrot.slane %v226, 2
    %v228 = vadd.f32 %v226, %v227
    %v229 = vrot.slane %v228, 1
    %v230 = vadd.f32 %v228, %v229
    %s231 = vtos %v230
    %v232 = vstv %s231
    %v233 = vmul.f32 %v232, 0.125
    %v234 = vadd.f32 %v166, %v233
    %s235 = scalar_lea.vmem %s2, 64
    %v236 = vld [vmem:[%s235] sm:$0xff]
    %v237 = vld [vmem:[%s235 + $0x8] sm:$0xff]
    %v238 = vld [vmem:[%s235 + $0x10] sm:$0xff]
    %v239 = vld [vmem:[%s235 + $0x18] sm:$0xff]
    %v240 = vmul.f32 %v15, %v236
    %v241 = vmul.f32 %v16, %v237
    %v242 = vmul.f32 %v17, %v238
    %v243 = vmul.f32 %v18, %v239
    %v244 = vsel %vm23, %v240, 0.0
    %v245 = vsel %vm23, %v241, 0.0
    %v246 = vadd.f32 %v244, %v245
    %v247 = vsel %vm23, %v242, 0.0
    %v248 = vadd.f32 %v246, %v247
    %v249 = vsel %vm23, %v243, 0.0
    %v250 = vadd.f32 %v248, %v249
    %v251 = vrot.slane %v250, 4
    %v252 = vadd.f32 %v250, %v251
    %v253 = vrot.slane %v252, 2
    %v254 = vadd.f32 %v252, %v253
    %v255 = vrot.slane %v254, 1
    %v256 = vadd.f32 %v254, %v255
    %v257 = vmul.f32 %v236, %v236
    %v258 = vmul.f32 %v237, %v237
    %v259 = vmul.f32 %v238, %v238
    %v260 = vmul.f32 %v239, %v239
    %v261 = vsel %vm23, %v257, 0.0
    %v262 = vsel %vm23, %v258, 0.0
    %v263 = vadd.f32 %v261, %v262
    %v264 = vsel %vm23, %v259, 0.0
    %v265 = vadd.f32 %v263, %v264
    %v266 = vsel %vm23, %v260, 0.0
    %v267 = vadd.f32 %v265, %v266
    %v268 = vrot.slane %v267, 4
    %v269 = vadd.f32 %v267, %v268
    %v270 = vrot.slane %v269, 2
    %v271 = vadd.f32 %v269, %v270
    %v272 = vrot.slane %v271, 1
    %v273 = vadd.f32 %v271, %v272
    %v274 = vrsqrt.pop %v273
    %v275 = vmul.f32 %v273, %v274
    %vm276 = vcmp.eq.f32.partialorder %v273, inf
    %v277 = vsel %vm276, %v273, %v275
    %vm278 = vcmp.eq.f32.partialorder %v273, 0.0
    %v279 = vand.u32 %v273, 2147483648
    %v280 = vsel %vm278, %v279, %v277
    %v281 = vmul.f32 %v43, %v280
    %v282 = vmax.f32 %v281, 1e-08
    %v283 = vrcp.pop %v282
    %v284 = vmul.f32 %v256, %v283
    %v285 = vsub.f32 %v284, %v216
    %v286 = vmul.f32 %v285, 0.5
    %v287 = vadd.f32 %v286, 0.3
    %v288 = vmax.f32 %v287, 0.0
    %v289 = vsel %vm49, %v288, 0.0
    %v290 = vsel %vm153, %v289, 0.0
    %291 = vadd.xlane.f32.xlu0 %v290
    %v292 = vpop.xlane.xlu0 %291
    %v293 = vrot.slane %v292, 4
    %v294 = vadd.f32 %v292, %v293
    %v295 = vrot.slane %v294, 2
    %v296 = vadd.f32 %v294, %v295
    %v297 = vrot.slane %v296, 1
    %v298 = vadd.f32 %v296, %v297
    %s299 = vtos %v298
    %v300 = vstv %s299
    %v301 = vmul.f32 %v300, 0.0625
    %v302 = vadd.f32 %v234, %v301
    %vm303 = vcmask 0
    %304 = vst.msk [vmem:[#allocation2] sm:$0x1] %vm303, %v302
    // Predicated region
    $region14: #{tpu_custom_call.1} parent=1 // pred_check
      _
    $region15: #{tpu_custom_call.1} parent=1 // pred_check_branch
      %306 = sbr.rel (0) target = $region17
    $region16: #{tpu_custom_call.1} parent=1 // pred_region
      %s308 = ssub.s32 16, 16
      %309 = vsyncadd [#allocation3], %s308
      %s311 = sshll.u32 [#allocation2], 4
      %s312 = int_to_ptr.vmem [resolvable:$true] %s311
      %314 = dma.vmem_to_hbm [thread:$0]  %s312, 16, %s3, [#allocation3]
    $region17: #{tpu_custom_call.1} parent=1 // pred_fallthru
      _
    // Predicated region
    $region18: #{tpu_custom_call.1} parent=1 // pred_check
      _
    $region19: #{tpu_custom_call.1} parent=1 // pred_check_branch
      %316 = sbr.rel (0) target = $region21
    $region20: #{tpu_custom_call.1} parent=1 // pred_region
      %317 = dma.done [#allocation3], 16
    $region21: #{tpu_custom_call.1} parent=1 // pred_fallthru
      _
    %318 = vsyncpa [#allocation3], 1

</llo_original>
